<compile_context>
chip_gen: v7x
topology: tpu7x:2x2x1
jax: 0.10.0
libtpu: 0.0.40
codegen_flags: <defaults>
</compile_context>

<pallas_src>
import functools

import jax
import jax.numpy as jnp
from jax import lax
from jax.experimental import pallas as pl
from jax.experimental.pallas import tpu as pltpu

ALPHA = 0.25
GAMMA = 2.0                      # exactly 2 -> squared, not pow
FOCAL_WEIGHT = 1.0
BCE_WEIGHT = 1.0
_TOT_W = FOCAL_WEIGHT + BCE_WEIGHT
FOCAL_W = FOCAL_WEIGHT / _TOT_W  # 0.5
BCE_W = BCE_WEIGHT / _TOT_W      # 0.5
EPS = 1e-6

LANE = 128
MAX_TILE_ROWS = 4096   # (4096,128) f32 block = 2 MiB; 2 inputs x 2 bufs = 8 MiB VMEM
ACC_ROWS = 8           # vreg-shaped accumulator (8 sublanes x 128 lanes)


def _cdiv(a, b):
    return -(-a // b)


def _round_up(x, m):
    return (x + m - 1) // m * m


def _focal_bce_partial_kernel(x_ref, y_ref, bce_out, foc_out, *,
                              steps, total_blocks, block_rows,
                              last_block_valid, needs_mask, has_overrun):
    c = pl.program_id(0)      # shard (megacore-parallel axis)
    i = pl.program_id(1)      # reduction step within shard (arbitrary axis)
    blk = c * steps + i       # global block index (unclamped)

    @pl.when(i == 0)
    def _init():
        bce_out[...] = jnp.zeros_like(bce_out)
        foc_out[...] = jnp.zeros_like(foc_out)

    def accumulate(x, y, valid=None):
        x = x.astype(jnp.float32)
        y = y.astype(jnp.float32)
        if valid is not None:
            # Mask BEFORE the transcendentals: a partial edge block's VMEM
            # padding holds arbitrary bits that could otherwise produce NaN.
            x = jnp.where(valid, x, 0.0)
            y = jnp.where(valid, y, 0.0)
        # binary_cross_entropy_with_logits (numerically stable form)
        bce = jnp.maximum(x, 0.0) - x * y + jnp.log1p(jnp.exp(-jnp.abs(x)))
        if valid is not None:
            # masked bce == 0  ->  pt == 1  ->  focal == 0 automatically
            bce = jnp.where(valid, bce, 0.0)
        pt = jnp.exp(-bce)
        focal = ALPHA * jnp.square(1.0 - pt) * bce          # gamma == 2
        # Fold the tile into a single vreg with pure VPU adds; the full
        # cross-lane/sublane reduce is deferred to the wrapper.
        bce_out[...] += jnp.sum(bce.reshape(-1, ACC_ROWS, LANE), axis=0)
        foc_out[...] += jnp.sum(focal.reshape(-1, ACC_ROWS, LANE), axis=0)

    def fast_block():
        accumulate(x_ref[...], y_ref[...])

    def tail_block():
        # Within-block element index (< block_rows*128 <= 524288: no i32 overflow).
        ridx = lax.broadcasted_iota(jnp.int32, (block_rows, LANE), 0)
        lidx = lax.broadcasted_iota(jnp.int32, (block_rows, LANE), 1)
        valid = ridx * LANE + lidx < last_block_valid
        accumulate(x_ref[...], y_ref[...], valid)

    if not needs_mask and not has_overrun:
        fast_block()                      # common case: branch-free
    else:
        fast_upper = total_blocks - 1 if needs_mask else total_blocks
        if fast_upper > 0:
            @pl.when(blk < fast_upper)
            def _fast():
                fast_block()
        if needs_mask:
            @pl.when(blk == total_blocks - 1)
            def _tail():
                tail_block()
        # Duplicated overrun points (blk >= total_blocks) match neither branch
        # and are skipped; their index_map clamps to the previous block so no
        # extra DMA is issued.


def focal_bce_loss(output, target):
    """output/target: matching shapes of logits / targets (any dtype; bf16 OK)."""
    x = output.reshape(-1)
    y = target.reshape(-1)
    n = x.shape[0]

    rows = _cdiv(n, LANE)
    if rows < 32:
        # Tiny input: round to an 8-row multiple so the vreg-shaped accumulate
        # always applies; the pad copy is negligible (< 4 KiB of rows).
        rows = max(_round_up(rows, ACC_ROWS), ACC_ROWS)
    n_slab = rows * LANE
    if n_slab != n:
        # Only ragged (n % 128 != 0) or tiny inputs reach this pad; lane-aligned
        # inputs are never copied.
        # TODO(synk): a fully copy-free ragged path would DMA the <128-elem tail
        # separately; jnp.pad costs one extra HBM copy only in this rare case.
        x = jnp.pad(x, (0, n_slab - n))
        y = jnp.pad(y, (0, n_slab - n))
    x2 = x.reshape(rows, LANE)   # free bitcast in the common case
    y2 = y.reshape(rows, LANE)

    # Block rows: as large as possible (multiple of 32 so f32/bf16/int8 sublane
    # tiling is satisfied); tiny inputs use the full-dim block.
    if rows < 32:
        block_rows = rows
    else:
        block_rows = min(MAX_TILE_ROWS, (rows // 32) * 32)
    total_blocks = _cdiv(rows, block_rows)

    # Shard blocks across TensorCores (v7x megacore); no padding introduced —
    # an odd block count just yields one duplicated (clamped + skipped) point.
    num_shards = 2 if total_blocks >= 2 else 1
    steps = _cdiv(total_blocks, num_shards)
    has_overrun = num_shards * steps != total_blocks

    block_elems = block_rows * LANE
    last_block_valid = n - (total_blocks - 1) * block_elems
    needs_mask = last_block_valid != block_elems

    kernel = functools.partial(
        _focal_bce_partial_kernel,
        steps=steps, total_blocks=total_blocks, block_rows=block_rows,
        last_block_valid=last_block_valid, needs_mask=needs_mask,
        has_overrun=has_overrun)

    if has_overrun:
        def in_idx(c, i):
            # Clamp: duplicated point maps to the same block as the previous
            # step in this shard -> Pallas elides the re-fetch (no extra DMA).
            return (jnp.minimum(c * steps + i, total_blocks - 1), 0)
    else:
        def in_idx(c, i):
            return (c * steps + i, 0)

    bytes_accessed = (x2.size * x2.dtype.itemsize + y2.size * y2.dtype.itemsize
                      + 2 * num_shards * ACC_ROWS * LANE * 4)

    bce_part, foc_part = pl.pallas_call(
        kernel,
        out_shape=(
            jax.ShapeDtypeStruct((num_shards, ACC_ROWS, LANE), jnp.float32),
            jax.ShapeDtypeStruct((num_shards, ACC_ROWS, LANE), jnp.float32),
        ),
        grid_spec=pltpu.PrefetchScalarGridSpec(
            num_scalar_prefetch=0,
            grid=(num_shards, steps),
            in_specs=[
                pl.BlockSpec((block_rows, LANE), in_idx),
                pl.BlockSpec((block_rows, LANE), in_idx),
            ],
            out_specs=(
                pl.BlockSpec((None, ACC_ROWS, LANE), lambda c, i: (c, 0, 0)),
                pl.BlockSpec((None, ACC_ROWS, LANE), lambda c, i: (c, 0, 0)),
            ),
        ),
        compiler_params=pltpu.CompilerParams(
            dimension_semantics=("parallel", "arbitrary"),
            vmem_limit_bytes=32 * 1024 * 1024),
        cost_estimate=pl.CostEstimate(
            flops=14 * n, transcendentals=3 * n, bytes_accessed=bytes_accessed),
    )(x2, y2)

    # Final (tiny) reduction + adaptive re-weighting on scalars.
    inv_n = jnp.float32(1.0 / n)
    l2 = jnp.sum(bce_part) * inv_n    # BCEWithLogitsLoss (mean)
    l1 = jnp.sum(foc_part) * inv_n    # FocalLoss (mean)
    tot = l1 + l2
    w1 = tot / (l1 + EPS) * FOCAL_W
    w2 = tot / (l2 + EPS) * BCE_W
    return w1 * l1 + w2 * l2


def _reference(output, target):
    x = output.astype(jnp.float32)
    y = target.astype(jnp.float32)
    bce = jnp.maximum(x, 0.0) - x * y + jnp.log1p(jnp.exp(-jnp.abs(x)))
    l2 = jnp.mean(bce)
    l1 = jnp.mean(ALPHA * (1.0 - jnp.exp(-bce)) ** GAMMA * bce)
    tot = l1 + l2
    w1 = tot / (l1 + EPS) * FOCAL_W
    w2 = tot / (l2 + EPS) * BCE_W
    return w1 * l1 + w2 * l2


def _check(logits, targets):
    loss = focal_bce_loss(logits, targets)
    jax.block_until_ready(loss)
    ref = _reference(logits, targets.astype(jnp.float32))
    assert jnp.allclose(loss, ref, rtol=1e-4, atol=1e-6), (loss, ref)


if __name__ == "__main__":
    key = jax.random.PRNGKey(0)
    keys = jax.random.split(key, 8)

    # 1) small NCHW case (module's typical use): single block, fast path only.
    logits = jax.random.normal(keys[0], (2, 4, 16, 16), dtype=jnp.float32) * 2.0
    targets = jax.random.bernoulli(keys[1], 0.3, (2, 4, 16, 16)).astype(jnp.bfloat16)
    _check(logits, targets)

    # 2) larger case: 4 full blocks, 2 shards x 2 steps, no masking, no copies.
    logits_l = jax.random.normal(keys[2], (8, 4, 256, 256), dtype=jnp.float32) * 2.0
    targets_l = jax.random.bernoulli(keys[3], 0.3, (8, 4, 256, 256)).astype(jnp.bfloat16)
    _check(logits_l, targets_l)

    # 3) ragged case (n % 128 != 0): exercises the masked tail block.
    logits_r = jax.random.normal(keys[4], (3, 4, 100, 100), dtype=jnp.float32) * 2.0
    targets_r = jax.random.bernoulli(keys[5], 0.3, (3, 4, 100, 100)).astype(jnp.bfloat16)
    _check(logits_r, targets_r)

    # 4) odd block count: exercises the clamped/skipped overrun grid point.
    logits_o = jax.random.normal(keys[6], (3, 4, 512, 256), dtype=jnp.float32) * 2.0
    targets_o = jax.random.bernoulli(keys[7], 0.3, (3, 4, 512, 256)).astype(jnp.bfloat16)
    _check(logits_o, targets_o)

    print("KERNEL_OK")
</pallas_src>

<mosaic_0001>
module attributes {stable_mosaic.version = 11 : i64} {
  func.func @_focal_bce_partial_kernel(%arg0: i32, %arg1: i32, %arg2: memref<16x128xf32, #tpu.memory_space<vmem>>, %arg3: memref<16x128xbf16, #tpu.memory_space<vmem>>, %arg4: memref<1x8x128xf32, #tpu.memory_space<vmem>>, %arg5: memref<1x8x128xf32, #tpu.memory_space<vmem>>) attributes {dimension_semantics = [#tpu.dimension_semantics<parallel>, #tpu.dimension_semantics<arbitrary>], iteration_bounds = array<i64: 1, 1>, scalar_prefetch = 0 : i64, scratch_operands = 0 : i64, tpu.core_type = #tpu.core_type<tc>, window_params = [{transform_indices = @transform_0, window_bounds = array<i64: 16, 128>}, {transform_indices = @transform_1, window_bounds = array<i64: 16, 128>}, {transform_indices = @transform_2, window_bounds = array<i64: 1, 8, 128>}, {transform_indices = @transform_3, window_bounds = array<i64: 1, 8, 128>}]} {
    %c0_i32 = arith.constant 0 : i32
    %0 = arith.cmpi eq, %arg1, %c0_i32 : i32
    %1 = arith.extui %0 : i1 to i32
    %c0_i32_0 = arith.constant 0 : i32
    %2 = arith.cmpi ne, %1, %c0_i32_0 : i32
    scf.if %2 {
      %cst_22 = arith.constant 0.000000e+00 : f32
      %41 = vector.broadcast %cst_22 : f32 to vector<8x128xf32>
      %c0_23 = arith.constant 0 : index
      %c0_24 = arith.constant 0 : index
      %c0_25 = arith.constant 0 : index
      %42 = vector.load %arg4[%c0_23, %c0_24, %c0_25] : memref<1x8x128xf32, #tpu.memory_space<vmem>>, vector<1x8x128xf32>
      %43 = vector.shape_cast %42 : vector<1x8x128xf32> to vector<8x128xf32>
      %44 = vector.shape_cast %41 : vector<8x128xf32> to vector<1x8x128xf32>
      tpu.vector_store %arg4[%c0_23, %c0_24, %c0_25], %44 {strides = array<i32>} : memref<1x8x128xf32, #tpu.memory_space<vmem>>, vector<1x8x128xf32>,
      %cst_26 = arith.constant 0.000000e+00 : f32
      %45 = vector.broadcast %cst_26 : f32 to vector<8x128xf32>
      %c0_27 = arith.constant 0 : index
      %c0_28 = arith.constant 0 : index
      %c0_29 = arith.constant 0 : index
      %46 = vector.load %arg5[%c0_27, %c0_28, %c0_29] : memref<1x8x128xf32, #tpu.memory_space<vmem>>, vector<1x8x128xf32>
      %47 = vector.shape_cast %46 : vector<1x8x128xf32> to vector<8x128xf32>
      %48 = vector.shape_cast %45 : vector<8x128xf32> to vector<1x8x128xf32>
      tpu.vector_store %arg5[%c0_27, %c0_28, %c0_29], %48 {strides = array<i32>} : memref<1x8x128xf32, #tpu.memory_space<vmem>>, vector<1x8x128xf32>,
    } else {
    }
    %c0 = arith.constant 0 : index
    %c0_1 = arith.constant 0 : index
    %3 = vector.load %arg2[%c0, %c0_1] : memref<16x128xf32, #tpu.memory_space<vmem>>, vector<16x128xf32>
    %c0_2 = arith.constant 0 : index
    %c0_3 = arith.constant 0 : index
    %4 = vector.load %arg3[%c0_2, %c0_3] : memref<16x128xbf16, #tpu.memory_space<vmem>>, vector<16x128xbf16>
    %5 = arith.extf %4 : vector<16x128xbf16> to vector<16x128xf32>
    %cst = arith.constant 0.000000e+00 : f32
    %6 = vector.broadcast %cst : f32 to vector<16x128xf32>
    %7 = arith.maximumf %3, %6 : vector<16x128xf32>
    %8 = arith.mulf %3, %5 : vector<16x128xf32>
    %9 = arith.subf %7, %8 : vector<16x128xf32>
    %10 = math.absf %3 : vector<16x128xf32>
    %cst_4 = arith.constant 0.000000e+00 : f32
    %11 = vector.broadcast %cst_4 : f32 to vector<16x128xf32>
    %12 = arith.subf %11, %10 : vector<16x128xf32>
    %13 = math.exp %12 : vector<16x128xf32>
    %14 = math.log1p %13 : vector<16x128xf32>
    %15 = arith.addf %9, %14 : vector<16x128xf32>
    %cst_5 = arith.constant 0.000000e+00 : f32
    %16 = vector.broadcast %cst_5 : f32 to vector<16x128xf32>
    %17 = arith.subf %16, %15 : vector<16x128xf32>
    %18 = math.exp %17 : vector<16x128xf32>
    %cst_6 = arith.constant 1.000000e+00 : f32
    %19 = vector.broadcast %cst_6 : f32 to vector<16x128xf32>
    %20 = arith.subf %19, %18 : vector<16x128xf32>
    %21 = arith.mulf %20, %20 : vector<16x128xf32>
    %cst_7 = arith.constant 2.500000e-01 : f32
    %22 = vector.broadcast %cst_7 : f32 to vector<16x128xf32>
    %23 = arith.mulf %22, %21 : vector<16x128xf32>
    %24 = arith.mulf %23, %15 : vector<16x128xf32>
    %c0_8 = arith.constant 0 : index
    %c0_9 = arith.constant 0 : index
    %c0_10 = arith.constant 0 : index
    %25 = vector.load %arg4[%c0_8, %c0_9, %c0_10] : memref<1x8x128xf32, #tpu.memory_space<vmem>>, vector<1x8x128xf32>
    %26 = vector.shape_cast %25 : vector<1x8x128xf32> to vector<8x128xf32>
    %27 = vector.shape_cast %15 : vector<16x128xf32> to vector<2x8x128xf32>
    %cst_11 = arith.constant dense<0.000000e+00> : vector<8x128xf32>
    %28 = vector.multi_reduction <add>, %27, %cst_11 [0] : vector<2x8x128xf32> to vector<8x128xf32>
    %29 = arith.addf %26, %28 : vector<8x128xf32>
    %c0_12 = arith.constant 0 : index
    %c0_13 = arith.constant 0 : index
    %c0_14 = arith.constant 0 : index
    %30 = vector.load %arg4[%c0_12, %c0_13, %c0_14] : memref<1x8x128xf32, #tpu.memory_space<vmem>>, vector<1x8x128xf32>
    %31 = vector.shape_cast %30 : vector<1x8x128xf32> to vector<8x128xf32>
    %32 = vector.shape_cast %29 : vector<8x128xf32> to vector<1x8x128xf32>
    tpu.vector_store %arg4[%c0_12, %c0_13, %c0_14], %32 {strides = array<i32>} : memref<1x8x128xf32, #tpu.memory_space<vmem>>, vector<1x8x128xf32>,
    %c0_15 = arith.constant 0 : index
    %c0_16 = arith.constant 0 : index
    %c0_17 = arith.constant 0 : index
    %33 = vector.load %arg5[%c0_15, %c0_16, %c0_17] : memref<1x8x128xf32, #tpu.memory_space<vmem>>, vector<1x8x128xf32>
    %34 = vector.shape_cast %33 : vector<1x8x128xf32> to vector<8x128xf32>
    %35 = vector.shape_cast %24 : vector<16x128xf32> to vector<2x8x128xf32>
    %cst_18 = arith.constant dense<0.000000e+00> : vector<8x128xf32>
    %36 = vector.multi_reduction <add>, %35, %cst_18 [0] : vector<2x8x128xf32> to vector<8x128xf32>
    %37 = arith.addf %34, %36 : vector<8x128xf32>
    %c0_19 = arith.constant 0 : index
    %c0_20 = arith.constant 0 : index
    %c0_21 = arith.constant 0 : index
    %38 = vector.load %arg5[%c0_19, %c0_20, %c0_21] : memref<1x8x128xf32, #tpu.memory_space<vmem>>, vector<1x8x128xf32>
    %39 = vector.shape_cast %38 : vector<1x8x128xf32> to vector<8x128xf32>
    %40 = vector.shape_cast %37 : vector<8x128xf32> to vector<1x8x128xf32>
    tpu.vector_store %arg5[%c0_19, %c0_20, %c0_21], %40 {strides = array<i32>} : memref<1x8x128xf32, #tpu.memory_space<vmem>>, vector<1x8x128xf32>,
    return
  }
  func.func @transform_0(%arg0: i32, %arg1: i32) -> (i32, i32) {
    %c1_i32 = arith.constant 1 : i32
    %0 = arith.muli %arg0, %c1_i32 : i32
    %1 = arith.addi %0, %arg1 : i32
    %c0_i32 = arith.constant 0 : i32
    %c0_i32_0 = arith.constant 0 : i32
    return %1, %c0_i32 : i32, i32
  }
  func.func @transform_1(%arg0: i32, %arg1: i32) -> (i32, i32) {
    %c1_i32 = arith.constant 1 : i32
    %0 = arith.muli %arg0, %c1_i32 : i32
    %1 = arith.addi %0, %arg1 : i32
    %c0_i32 = arith.constant 0 : i32
    %c0_i32_0 = arith.constant 0 : i32
    return %1, %c0_i32 : i32, i32
  }
  func.func @transform_2(%arg0: i32, %arg1: i32) -> (i32, i32, i32) {
    %c0_i32 = arith.constant 0 : i32
    %c0_i32_0 = arith.constant 0 : i32
    %c0_i32_1 = arith.constant 0 : i32
    return %arg0, %c0_i32, %c0_i32_0 : i32, i32, i32
  }
  func.func @transform_3(%arg0: i32, %arg1: i32) -> (i32, i32, i32) {
    %c0_i32 = arith.constant 0 : i32
    %c0_i32_0 = arith.constant 0 : i32
    %c0_i32_1 = arith.constant 0 : i32
    return %arg0, %c0_i32, %c0_i32_0 : i32, i32, i32
  }
}

</mosaic_0001>

<llo_original>
// kernel: tpu_custom_call.1
$region0: #{tpu_custom_call.1}
  #allocation0 [shape = 'u32[]', space=smem, size = 0x4, offset = 0x4, fixed_abs, tag = 'smem constant byte address 0x4 - core index']
  #allocation1 [shape = 'u32[144,128]{1,0:T(1,128)}', space=vmem, size = 0x12000, scoped, tag = 'internal scratch']
  %s0 = inlined_call_operand.hbm [shape: f32[16,128], index: 0, kind: input, shape index: {}]
  %s1 = inlined_call_operand.hbm [shape: bf16[16,128], index: 1, kind: input, shape index: {}]
  %s2 = inlined_call_operand.hbm [shape: f32[1,8,128], index: 2, kind: output, shape index: {0}]
  %s3 = inlined_call_operand.hbm [shape: f32[1,8,128], index: 3, kind: output, shape index: {1}]
  %4 = xla_tuple %s2, %s3
  %s5 = sld [smem:[#allocation0]]
  $region38: #{tpu_custom_call.1} parent=0
    _
  %s7 = ssub.s32 1, %s5
  %s8 = scalar_select 0, %s7, %s5
  $region1: #{tpu_custom_call.1} parent=0
    #allocation2 [shape = 'u8[8192]{0}', space=vmem, size = 0x2000, scoped, tag = 'input window, operand 0, single buffered']
    #allocation3 [shape = 's32[1]{0}', space=sflag, size = 0x4, scoped, tag = 'scoped memory for tpu_custom_call.1']
    #allocation4 [shape = 's32[1]{0}', space=sflag, size = 0x4, scoped, tag = 'scoped memory for tpu_custom_call.1']
    #allocation5 [shape = 'u8[4096]{0}', space=vmem, size = 0x1000, scoped, tag = 'input window, operand 1, single buffered']
    #allocation6 [shape = 's32[1]{0}', space=sflag, size = 0x4, scoped, tag = 'scoped memory for tpu_custom_call.1']
    #allocation7 [shape = 'u8[4096]{0}', space=vmem, size = 0x1000, scoped, tag = 'output window, operand 0, single buffered']
    #allocation8 [shape = 'u8[4096]{0}', space=vmem, size = 0x1000, scoped, tag = 'output window, operand 1, single buffered']
    #allocation9 [shape = 's32[1]{0}', space=sflag, size = 0x4, scoped, tag = 'scoped memory for tpu_custom_call.1']
    %9 = vsyncpa [#allocation3], 0
    %10 = vsyncpa [#allocation6], 0
    %11 = vsyncpa [#allocation4], 0
    %12 = vsyncpa [#allocation9], 0
    // Predicated region
    $region2: #{tpu_custom_call.1} parent=1 // pred_check
      _
    $region3: #{tpu_custom_call.1} parent=1 // pred_check_branch
      %14 = sbr.rel (0) target = $region5
    $region4: #{tpu_custom_call.1} parent=1 // pred_region
      %s15 = sadd.s32 0, 0
      %s16 = smul.u32 2, %s15
      %s18 = ssub.s32 256, 256
      %19 = vsyncadd [#allocation3], %s18
      %s20 = smul.addr %s16, 128
      %s21 = scalar_lea.hbm %s0, %s20
      %s22 = sshll.u32 [#allocation2], 4
      %s23 = int_to_ptr.vmem [resolvable:$true] %s22
      %28 = dma.hbm_to_vmem [thread:$0]  %s21, 256, %s23, [#allocation3], 128, 128, 8
    $region5: #{tpu_custom_call.1} parent=1 // pred_fallthru
      _
    // Predicated region
    $region6: #{tpu_custom_call.1} parent=1 // pred_check
      _
    $region7: #{tpu_custom_call.1} parent=1 // pred_check_branch
      %30 = sbr.rel (0) target = $region9
    $region8: #{tpu_custom_call.1} parent=1 // pred_region
      %s31 = sadd.s32 0, 0
      %s32 = smul.u32 2, %s31
      %s34 = ssub.s32 128, 128
      %35 = vsyncadd [#allocation6], %s34
      %s36 = smul.addr %s32, 64
      %s37 = scalar_lea.hbm %s1, %s36
      %s38 = sshll.u32 [#allocation5], 4
      %s39 = int_to_ptr.vmem [resolvable:$true] %s38
      %44 = dma.hbm_to_vmem [thread:$0]  %s37, 128, %s39, [#allocation6], 64, 64, 4
    $region9: #{tpu_custom_call.1} parent=1 // pred_fallthru
      _
    // Predicated region
    $region10: #{tpu_custom_call.1} parent=1 // pred_check
      _
    $region11: #{tpu_custom_call.1} parent=1 // pred_check_branch
      %46 = sbr.rel (0) target = $region13
    $region12: #{tpu_custom_call.1} parent=1 // pred_region
      %47 = dma.done [#allocation3], 256
    $region13: #{tpu_custom_call.1} parent=1 // pred_fallthru
      _
    // Predicated region
    $region14: #{tpu_custom_call.1} parent=1 // pred_check
      _
    $region15: #{tpu_custom_call.1} parent=1 // pred_check_branch
      %49 = sbr.rel (0) target = $region17
    $region16: #{tpu_custom_call.1} parent=1 // pred_region
      %50 = dma.done [#allocation6], 128
    $region17: #{tpu_custom_call.1} parent=1 // pred_fallthru
      _
    %s51 = sadd.s32 0, 0
    %s52 = smul.u32 2, %s51
    %s53 = sadd.s32 0, 0
    %s54 = smul.u32 2, %s53
    %p55 = scmp.eq.s32.totalorder 0, 0
    // Predicated region
    $region18: #{tpu_custom_call.1} parent=1 // pred_check
      %p56 = pneg %p55
    $region19: #{tpu_custom_call.1} parent=1 // pred_check_branch
      %58 = sbr.rel (%p56) target = $region21
    $region20: #{tpu_custom_call.1} parent=1 // pred_region
      %59 = vst [vmem:[#allocation7] sm:$0xff] 0.0
      %60 = vst [vmem:[#allocation8] sm:$0xff] 0.0
    $region21: #{tpu_custom_call.1} parent=1 // pred_fallthru
      _
    %v61 = vld [vmem:[#allocation2] sm:$0xff]
    %v62 = vld [vmem:[#allocation2 + $0x8] sm:$0xff]
    %v63 = vld [vmem:[#allocation5] sm:$0xf]
    %v64 = vld [vmem:[#allocation5 + $0x4] sm:$0xf]
    %v65 = vunpack.c.l.bf16 %v63
    %v66 = vunpack.c.l.bf16 %v64
    %v67 = vmax.f32 %v61, 0.0
    %v68 = vmax.f32 %v62, 0.0
    %v69 = vmul.f32 %v61, %v65
    %v70 = vmul.f32 %v62, %v66
    %v71 = vsub.f32 %v67, %v69
    %v72 = vsub.f32 %v68, %v70
    %v73 = vand.u32 2147483647, %v61
    %v74 = vand.u32 2147483647, %v62
    %v75 = vsub.f32 0.0, %v73
    %v76 = vsub.f32 0.0, %v74
    %v77 = vmul.f32 %v75, 1.442695
    %v78 = vpow.pop %v77
    %v79 = vmul.f32 %v76, 1.442695
    %v80 = vpow.pop %v79
    %v81 = vadd.f32 %v78, 1.0
    %v82 = vlog2.pop %v81
    %v83 = vmul.f32 %v82, 0.6931472
    %v84 = vmul.f32 -0.5, %v78
    %v85 = vadd.f32 %v84, 1.0
    %v86 = vmul.f32 %v85, %v78
    %v87 = vand.u32 2147483647, %v78
    %vm88 = vcmp.lt.f32.partialorder %v87, 0.0004427343
    %v89 = vsel %vm88, %v86, %v83
    %v90 = vadd.f32 %v80, 1.0
    %v91 = vlog2.pop %v90
    %v92 = vmul.f32 %v91, 0.6931472
    %v93 = vmul.f32 -0.5, %v80
    %v94 = vadd.f32 %v93, 1.0
    %v95 = vmul.f32 %v94, %v80
    %v96 = vand.u32 2147483647, %v80
    %vm97 = vcmp.lt.f32.partialorder %v96, 0.0004427343
    %v98 = vsel %vm97, %v95, %v92
    %v99 = vadd.f32 %v71, %v89
    %v100 = vadd.f32 %v72, %v98
    %v101 = vsub.f32 0.0, %v99
    %v102 = vsub.f32 0.0, %v100
    %v103 = vmul.f32 %v101, 1.442695
    %v104 = vpow.pop %v103
    %v105 = vmul.f32 %v102, 1.442695
    %v106 = vpow.pop %v105
    %v107 = vsub.f32 1.0, %v104
    %v108 = vsub.f32 1.0, %v106
    %v109 = vmul.f32 %v107, %v107
    %v110 = vmul.f32 %v108, %v108
    %v111 = vmul.f32 %v109, 0.25
    %v112 = vmul.f32 %v110, 0.25
    %v113 = vmul.f32 %v111, %v99
    %v114 = vmul.f32 %v112, %v100
    %v115 = vld [vmem:[#allocation7] sm:$0xff]
    %v116 = vadd.f32 %v99, %v100
    %v117 = vadd.f32 %v115, %v116
    %118 = vst [vmem:[#allocation7] sm:$0xff] %v117
    %v119 = vld [vmem:[#allocation8] sm:$0xff]
    %v120 = vadd.f32 %v113, %v114
    %v121 = vadd.f32 %v119, %v120
    %122 = vst [vmem:[#allocation8] sm:$0xff] %v121
    // Predicated region
    $region22: #{tpu_custom_call.1} parent=1 // pred_check
      _
    $region23: #{tpu_custom_call.1} parent=1 // pred_check_branch
      %124 = sbr.rel (0) target = $region25
    $region24: #{tpu_custom_call.1} parent=1 // pred_region
      %s126 = ssub.s32 128, 128
      %127 = vsyncadd [#allocation4], %s126
      %s129 = sshll.u32 [#allocation7], 4
      %s130 = int_to_ptr.vmem [resolvable:$true] %s129
      %132 = dma.vmem_to_hbm [thread:$0]  %s130, 128, %s2, [#allocation4]
    $region25: #{tpu_custom_call.1} parent=1 // pred_fallthru
      _
    // Predicated region
    $region26: #{tpu_custom_call.1} parent=1 // pred_check
      _
    $region27: #{tpu_custom_call.1} parent=1 // pred_check_branch
      %134 = sbr.rel (0) target = $region29
    $region28: #{tpu_custom_call.1} parent=1 // pred_region
      %s136 = ssub.s32 128, 128
      %137 = vsyncadd [#allocation9], %s136
      %s139 = sshll.u32 [#allocation8], 4
      %s140 = int_to_ptr.vmem [resolvable:$true] %s139
      %142 = dma.vmem_to_hbm [thread:$0]  %s140, 128, %s3, [#allocation9]
    $region29: #{tpu_custom_call.1} parent=1 // pred_fallthru
      _
    // Predicated region
    $region30: #{tpu_custom_call.1} parent=1 // pred_check
      _
    $region31: #{tpu_custom_call.1} parent=1 // pred_check_branch
      %144 = sbr.rel (0) target = $region33
    $region32: #{tpu_custom_call.1} parent=1 // pred_region
      %145 = dma.done [#allocation4], 128
    $region33: #{tpu_custom_call.1} parent=1 // pred_fallthru
      _
    // Predicated region
    $region34: #{tpu_custom_call.1} parent=1 // pred_check
      _
    $region35: #{tpu_custom_call.1} parent=1 // pred_check_branch
      %147 = sbr.rel (0) target = $region37
    $region36: #{tpu_custom_call.1} parent=1 // pred_region
      %148 = dma.done [#allocation9], 128
    $region37: #{tpu_custom_call.1} parent=1 // pred_fallthru
      _
    %149 = vsyncpa [#allocation3], 1
    %150 = vsyncpa [#allocation6], 1
    %151 = vsyncpa [#allocation4], 1
    %152 = vsyncpa [#allocation9], 1

</llo_original>
